<compile_context>
chip_gen: v5e
topology: v5e:2x2
jax: 0.10.0
libtpu: 0.0.40
codegen_flags: <defaults>
</compile_context>

<pallas_src>
import jax
import jax.numpy as jnp
from jax.experimental import pallas as pl
from jax.experimental.pallas import tpu as pltpu

HIDDEN = 20   # logical hidden width of the PINN
HP = 32       # hidden width zero-padded to a sublane multiple


def pinn_kernel(inp_ref, w1_ref, w_ref, b_ref, o_ref):
    # inp_ref : (2, B)       row 0 = x, row 1 = t, batch on the lane axis
    # w1_ref  : (HP, 2)      layer-1 weight (out, in), rows >= 20 are zero
    # w_ref   : (3, HP, HP)  layers 2..4 weights (out, in), zero-padded
    # b_ref   : (4, HP, 1)   all biases, zero-padded
    # o_ref   : (1, B)       lane-dense output row
    inp = inp_ref[...]                                              # (2, B)
    w1 = w1_ref[...]                                                # (HP, 2)

    # Layer 1:  W1 @ [x; t] + b1  done as two broadcast FMAs on the VPU
    # (K=2 is far too skinny to be worth an MXU pass).
    h = (w1[:, 0:1] * inp[0:1, :]
         + w1[:, 1:2] * inp[1:2, :]
         + b_ref[0])                                                # (HP, B)
    h = jnp.tanh(h)

    # Layer 2
    h = jnp.dot(w_ref[0], h, preferred_element_type=jnp.float32) + b_ref[1]
    h = jnp.tanh(h)

    # Layer 3
    h = jnp.dot(w_ref[1], h, preferred_element_type=jnp.float32) + b_ref[2]
    h = jnp.tanh(h)

    # Output layer (no activation); only row 0 of the padded result is real.
    h = jnp.dot(w_ref[2], h, preferred_element_type=jnp.float32) + b_ref[3]
    o_ref[...] = h[0:1, :]                                          # (1, B)


def pinn_forward(x, t, packed, *, tm=1024):
    """x, t: (N, 1) float32.  Returns (N, 1) float32 (== PyTorch forward)."""
    assert tm % 128 == 0, "batch tile must be a multiple of 128 lanes"
    N = x.shape[0]
    w1p, wpack, bpack = packed

    # Merge x and t into a single (2, N) lane-major input stream.
    inp = jnp.concatenate([x.T, t.T], axis=0).astype(jnp.float32)   # (2, N)

    n_tiles = pl.cdiv(N, tm)
    n_pad = n_tiles * tm
    if n_pad != N:
        inp = jnp.pad(inp, ((0, 0), (0, n_pad - N)))                # zero tail

    out = pl.pallas_call(
        pinn_kernel,
        out_shape=jax.ShapeDtypeStruct((1, n_pad), jnp.float32),
        grid_spec=pltpu.PrefetchScalarGridSpec(
            num_scalar_prefetch=0,
            grid=(n_tiles,),
            in_specs=[
                pl.BlockSpec((2, tm), lambda i: (0, i)),        # x/t tile
                pl.BlockSpec((HP, 2), lambda i: (0, 0)),        # W1 (resident)
                pl.BlockSpec((3, HP, HP), lambda i: (0, 0, 0)), # W2..W4
                pl.BlockSpec((4, HP, 1), lambda i: (0, 0, 0)),  # biases
            ],
            out_specs=pl.BlockSpec((1, tm), lambda i: (0, i)),
        ),
        compiler_params=pltpu.CompilerParams(
            dimension_semantics=("parallel",)),
    )(inp, w1p, wpack, bpack)

    return out[:, :N].reshape(N, 1)


def init_params(key):
    """Raw torch-style params: list of (W (out,in), b (out,)) per layer,
    initialized U(-1/sqrt(fan_in), 1/sqrt(fan_in)) like nn.Linear."""
    dims = [(2, HIDDEN), (HIDDEN, HIDDEN), (HIDDEN, HIDDEN), (HIDDEN, 1)]
    raw = []
    for fan_in, fan_out in dims:
        key, kw, kb = jax.random.split(key, 3)
        bound = float(1.0 / (fan_in ** 0.5))
        w = jax.random.uniform(kw, (fan_out, fan_in), jnp.float32, -bound, bound)
        b = jax.random.uniform(kb, (fan_out,), jnp.float32, -bound, bound)
        raw.append((w, b))
    return raw


def pack_params(raw):
    """Zero-pad to HP=32 and pack into the kernel's constant arrays."""
    (w1, b1), (w2, b2), (w3, b3), (w4, b4) = raw

    w1p = jnp.zeros((HP, 2), jnp.float32).at[:w1.shape[0], :].set(w1)

    def pad_sq(w):
        return jnp.zeros((HP, HP), jnp.float32).at[:w.shape[0], :w.shape[1]].set(w)

    wpack = jnp.stack([pad_sq(w2), pad_sq(w3), pad_sq(w4)])          # (3, HP, HP)

    def pad_b(b):
        return jnp.zeros((HP, 1), jnp.float32).at[:b.shape[0], 0].set(b)

    bpack = jnp.stack([pad_b(b1), pad_b(b2), pad_b(b3), pad_b(b4)])  # (4, HP, 1)
    return w1p, wpack, bpack


def pinn_reference(x, t, raw):
    """Pure-JAX reference matching the PyTorch module exactly."""
    h = jnp.concatenate([x, t], axis=1)                              # (N, 2)
    for i, (w, b) in enumerate(raw):
        h = h @ w.T + b
        if i < 3:
            h = jnp.tanh(h)
    return h


if __name__ == "__main__":
    key = jax.random.PRNGKey(0)
    kx, kt, kp = jax.random.split(key, 3)

    # Small deterministic demo: N not a tile multiple to exercise padding,
    # tm=256 so the (parallel) grid has multiple steps even at small N.
    N = 700
    x = jax.random.uniform(kx, (N, 1), jnp.float32)   # spatial coordinate
    t = jax.random.uniform(kt, (N, 1), jnp.float32)   # time coordinate

    raw = init_params(kp)
    packed = pack_params(raw)

    # alpha parameter exists in the module but is unused in forward()
    alpha = jnp.array([0.5], dtype=jnp.float32)  # noqa: F841

    out = pinn_forward(x, t, packed, tm=256)
    out = jax.block_until_ready(out)

    ref = pinn_reference(x, t, raw)
    assert out.shape == (N, 1)
    assert jnp.allclose(out, ref, atol=1e-4, rtol=1e-4), "mismatch vs reference"

    print("KERNEL_OK")
</pallas_src>

<mosaic_0001>
module attributes {stable_mosaic.version = 11 : i64} {
  func.func @pinn_kernel(%arg0: i32, %arg1: memref<2x256xf32, #tpu.memory_space<vmem>>, %arg2: memref<32x2xf32, #tpu.memory_space<vmem>>, %arg3: memref<3x32x32xf32, #tpu.memory_space<vmem>>, %arg4: memref<4x32x1xf32, #tpu.memory_space<vmem>>, %arg5: memref<1x256xf32, #tpu.memory_space<vmem>>) attributes {dimension_semantics = [#tpu.dimension_semantics<parallel>], iteration_bounds = array<i64: 3>, scalar_prefetch = 0 : i64, scratch_operands = 0 : i64, tpu.core_type = #tpu.core_type<tc>, window_params = [{transform_indices = @transform_0, window_bounds = array<i64: 2, 256>}, {pipeline_mode = #tpu.pipeline_mode<synchronous>, transform_indices = @transform_1, window_bounds = array<i64: 32, 2>}, {pipeline_mode = #tpu.pipeline_mode<synchronous>, transform_indices = @transform_2, window_bounds = array<i64: 3, 32, 32>}, {pipeline_mode = #tpu.pipeline_mode<synchronous>, transform_indices = @transform_3, window_bounds = array<i64: 4, 32, 1>}, {transform_indices = @transform_4, window_bounds = array<i64: 1, 256>}]} {
    %c0 = arith.constant 0 : index
    %c0_0 = arith.constant 0 : index
    %0 = vector.load %arg1[%c0, %c0_0] : memref<2x256xf32, #tpu.memory_space<vmem>>, vector<2x256xf32>
    %c0_1 = arith.constant 0 : index
    %c0_2 = arith.constant 0 : index
    %1 = vector.load %arg2[%c0_1, %c0_2] : memref<32x2xf32, #tpu.memory_space<vmem>>, vector<32x2xf32>
    %2 = vector.extract_strided_slice %1 {offsets = [0, 0], sizes = [32, 1], strides = [1, 1]} : vector<32x2xf32> to vector<32x1xf32>
    %3 = vector.extract_strided_slice %0 {offsets = [0, 0], sizes = [1, 256], strides = [1, 1]} : vector<2x256xf32> to vector<1x256xf32>
    %4 = vector.broadcast %2 : vector<32x1xf32> to vector<32x256xf32>
    %5 = vector.broadcast %3 : vector<1x256xf32> to vector<32x256xf32>
    %6 = arith.mulf %4, %5 : vector<32x256xf32>
    %7 = vector.extract_strided_slice %1 {offsets = [0, 1], sizes = [32, 1], strides = [1, 1]} : vector<32x2xf32> to vector<32x1xf32>
    %8 = vector.extract_strided_slice %0 {offsets = [1, 0], sizes = [1, 256], strides = [1, 1]} : vector<2x256xf32> to vector<1x256xf32>
    %9 = vector.broadcast %7 : vector<32x1xf32> to vector<32x256xf32>
    %10 = vector.broadcast %8 : vector<1x256xf32> to vector<32x256xf32>
    %11 = arith.mulf %9, %10 : vector<32x256xf32>
    %12 = arith.addf %6, %11 : vector<32x256xf32>
    %c0_3 = arith.constant 0 : index
    %c0_4 = arith.constant 0 : index
    %c0_5 = arith.constant 0 : index
    %13 = vector.load %arg4[%c0_3, %c0_4, %c0_5] : memref<4x32x1xf32, #tpu.memory_space<vmem>>, vector<1x32x1xf32>
    %14 = vector.shape_cast %13 : vector<1x32x1xf32> to vector<32x1xf32>
    %15 = vector.broadcast %14 : vector<32x1xf32> to vector<32x256xf32>
    %16 = arith.addf %12, %15 : vector<32x256xf32>
    %17 = math.tanh %16 : vector<32x256xf32>
    %c0_6 = arith.constant 0 : index
    %c0_7 = arith.constant 0 : index
    %c0_8 = arith.constant 0 : index
    %18 = vector.load %arg3[%c0_6, %c0_7, %c0_8] : memref<3x32x32xf32, #tpu.memory_space<vmem>>, vector<1x32x32xf32>
    %19 = vector.shape_cast %18 : vector<1x32x32xf32> to vector<32x32xf32>
    %cst = arith.constant dense<0.000000e+00> : vector<32x256xf32>
    %20 = tpu.matmul %19, %17, %cst {dimension_numbers = #tpu.dot_dimension_numbers<[1], [0], [0], [1], [0, 0, 1, 1], [], []>} : vector<32x32xf32>, vector<32x256xf32>, vector<32x256xf32> -> vector<32x256xf32>
    %c1 = arith.constant 1 : index
    %c0_9 = arith.constant 0 : index
    %c0_10 = arith.constant 0 : index
    %21 = vector.load %arg4[%c1, %c0_9, %c0_10] : memref<4x32x1xf32, #tpu.memory_space<vmem>>, vector<1x32x1xf32>
    %22 = vector.shape_cast %21 : vector<1x32x1xf32> to vector<32x1xf32>
    %23 = vector.broadcast %22 : vector<32x1xf32> to vector<32x256xf32>
    %24 = arith.addf %20, %23 : vector<32x256xf32>
    %25 = math.tanh %24 : vector<32x256xf32>
    %c1_11 = arith.constant 1 : index
    %c0_12 = arith.constant 0 : index
    %c0_13 = arith.constant 0 : index
    %26 = vector.load %arg3[%c1_11, %c0_12, %c0_13] : memref<3x32x32xf32, #tpu.memory_space<vmem>>, vector<1x32x32xf32>
    %27 = vector.shape_cast %26 : vector<1x32x32xf32> to vector<32x32xf32>
    %cst_14 = arith.constant dense<0.000000e+00> : vector<32x256xf32>
    %28 = tpu.matmul %27, %25, %cst_14 {dimension_numbers = #tpu.dot_dimension_numbers<[1], [0], [0], [1], [0, 0, 1, 1], [], []>} : vector<32x32xf32>, vector<32x256xf32>, vector<32x256xf32> -> vector<32x256xf32>
    %c2 = arith.constant 2 : index
    %c0_15 = arith.constant 0 : index
    %c0_16 = arith.constant 0 : index
    %29 = vector.load %arg4[%c2, %c0_15, %c0_16] : memref<4x32x1xf32, #tpu.memory_space<vmem>>, vector<1x32x1xf32>
    %30 = vector.shape_cast %29 : vector<1x32x1xf32> to vector<32x1xf32>
    %31 = vector.broadcast %30 : vector<32x1xf32> to vector<32x256xf32>
    %32 = arith.addf %28, %31 : vector<32x256xf32>
    %33 = math.tanh %32 : vector<32x256xf32>
    %c2_17 = arith.constant 2 : index
    %c0_18 = arith.constant 0 : index
    %c0_19 = arith.constant 0 : index
    %34 = vector.load %arg3[%c2_17, %c0_18, %c0_19] : memref<3x32x32xf32, #tpu.memory_space<vmem>>, vector<1x32x32xf32>
    %35 = vector.shape_cast %34 : vector<1x32x32xf32> to vector<32x32xf32>
    %cst_20 = arith.constant dense<0.000000e+00> : vector<32x256xf32>
    %36 = tpu.matmul %35, %33, %cst_20 {dimension_numbers = #tpu.dot_dimension_numbers<[1], [0], [0], [1], [0, 0, 1, 1], [], []>} : vector<32x32xf32>, vector<32x256xf32>, vector<32x256xf32> -> vector<32x256xf32>
    %c3 = arith.constant 3 : index
    %c0_21 = arith.constant 0 : index
    %c0_22 = arith.constant 0 : index
    %37 = vector.load %arg4[%c3, %c0_21, %c0_22] : memref<4x32x1xf32, #tpu.memory_space<vmem>>, vector<1x32x1xf32>
    %38 = vector.shape_cast %37 : vector<1x32x1xf32> to vector<32x1xf32>
    %39 = vector.broadcast %38 : vector<32x1xf32> to vector<32x256xf32>
    %40 = arith.addf %36, %39 : vector<32x256xf32>
    %41 = vector.extract_strided_slice %40 {offsets = [0, 0], sizes = [1, 256], strides = [1, 1]} : vector<32x256xf32> to vector<1x256xf32>
    %c0_23 = arith.constant 0 : index
    %c0_24 = arith.constant 0 : index
    %42 = vector.load %arg5[%c0_23, %c0_24] : memref<1x256xf32, #tpu.memory_space<vmem>>, vector<1x256xf32>
    tpu.vector_store %arg5[%c0_23, %c0_24], %41 {strides = array<i32>} : memref<1x256xf32, #tpu.memory_space<vmem>>, vector<1x256xf32>,
    return
  }
  func.func @transform_0(%arg0: i32) -> (i32, i32) {
    %c0_i32 = arith.constant 0 : i32
    %c0_i32_0 = arith.constant 0 : i32
    return %c0_i32, %arg0 : i32, i32
  }
  func.func @transform_1(%arg0: i32) -> (i32, i32) {
    %c0_i32 = arith.constant 0 : i32
    %c0_i32_0 = arith.constant 0 : i32
    %c0_i32_1 = arith.constant 0 : i32
    return %c0_i32, %c0_i32_0 : i32, i32
  }
  func.func @transform_2(%arg0: i32) -> (i32, i32, i32) {
    %c0_i32 = arith.constant 0 : i32
    %c0_i32_0 = arith.constant 0 : i32
    %c0_i32_1 = arith.constant 0 : i32
    %c0_i32_2 = arith.constant 0 : i32
    return %c0_i32, %c0_i32_0, %c0_i32_1 : i32, i32, i32
  }
  func.func @transform_3(%arg0: i32) -> (i32, i32, i32) {
    %c0_i32 = arith.constant 0 : i32
    %c0_i32_0 = arith.constant 0 : i32
    %c0_i32_1 = arith.constant 0 : i32
    %c0_i32_2 = arith.constant 0 : i32
    return %c0_i32, %c0_i32_0, %c0_i32_1 : i32, i32, i32
  }
  func.func @transform_4(%arg0: i32) -> (i32, i32) {
    %c0_i32 = arith.constant 0 : i32
    %c0_i32_0 = arith.constant 0 : i32
    return %c0_i32, %arg0 : i32, i32
  }
}

</mosaic_0001>

<llo_original>
// kernel: tpu_custom_call.1
$region0: #{tpu_custom_call.1}
  #allocation0 [shape = 'u32[]', space=smem, size = 0x4, offset = 0x4, fixed_abs, tag = 'smem constant byte address 0x4 - core index']
  #allocation1 [shape = 'u32[72,128]{1,0:T(1,128)}', space=vmem, size = 0x9000, scoped, tag = 'internal scratch']
  %s0 = inlined_call_operand.vmem [shape: f32[2,768], index: 0, kind: input, shape index: {}]
  %s1 = inlined_call_operand.vmem [shape: f32[32,2], index: 1, kind: input, shape index: {}]
  %s2 = inlined_call_operand.vmem [shape: f32[3,32,32], index: 2, kind: input, shape index: {}]
  %s3 = inlined_call_operand.vmem [shape: f32[4,32,1], index: 3, kind: input, shape index: {}]
  %s4 = inlined_call_operand.hbm [shape: f32[1,768], index: 4, kind: output, shape index: {}]
  %s5 = sld [smem:[#allocation0]]
  $region49: #{tpu_custom_call.1} parent=0
    _
  %s7 = ssub.s32 1, %s5
  %s8 = scalar_select 0, %s7, %s5
  $region1: #{tpu_custom_call.1} parent=0
    #allocation2 [shape = 'u8[2048]{0}', space=vmem, size = 0x800, scoped, tag = 'output window, operand 0']
    #allocation3 [shape = 's32[2]{0}', space=sflag, size = 0x8, scoped, tag = 'scoped memory for tpu_custom_call.1']
    %9 = vsyncpa [#allocation3], 0
    %s10 = scalar_lea.sflag [#allocation3], 1
    %11 = vsyncpa %s10, 0
    loop: start=0, step=1, limit=5
    $region2: #{tpu_custom_call.1} parent=1 // loop_pre_header
      _
    $region3: #{tpu_custom_call.1} parent=1 // loop_header
      %s13 = sphi 0, %s17
      %p14 = scmp.ge.s32.totalorder %s13, 5
      %s23 = sphi 0, %s25
      %s26 = sphi 0, %s23
      %s27 = sphi 0, %s26
      %s43 = sphi 0, %s27
      %s47 = sphi 0, %s47
      %s49 = sphi 0, %s47
      %s50 = sphi 0, %s49
      %s64 = sphi 0, %s50
      %s68 = sphi 0, %s68
      %s70 = sphi 0, %s68
      %s71 = sphi 0, %s70
      %s85 = sphi 0, %s71
      %s89 = sphi 0, %s89
      %s91 = sphi 0, %s89
      %s92 = sphi 0, %s91
      %s106 = sphi 0, %s92
      %s112 = sphi 0, %s114
      %s115 = sphi 0, %s112
      %s116 = sphi 0, %s115
      %s132 = sphi 0, %s116
    $region4: #{tpu_custom_call.1} parent=1 // loop_header_branch
      %16 = sbr.rel (%p14) target = $region8
    $region5: #{tpu_custom_call.1} parent=1 // loop_body
      %s18 = ssub.s32 %s13, 1
      %s19 = ssub.s32 %s13, 2
      %s20 = sadd.s32 %s13, 1
      %s21 = ssub.s32 %s13, %s20
      %p22 = scmp.eq.s32.totalorder %s21, 0
      %s24 = sadd.s32 %s23, 1
      %s25 = scalar_select %p22, %s23, %s24
      %p28 = pneg %p22
      %p29 = scmp.eq.s32.totalorder %s13, 2
      %p30 = por %p28, %p29
      %p31 = scmp.ne.s32.totalorder %s23, %s26
      %p32 = scmp.eq.s32.totalorder %s13, 0
      %p33 = por %p31, %p32
      %p34 = scmp.ne.s32.totalorder %s23, %s26
      %p35 = scmp.eq.s32.totalorder %s18, 2
      %p36 = por %p34, %p35
      %p37 = scmp.ne.s32.totalorder %s26, %s27
      %p38 = scmp.eq.s32.totalorder %s18, 0
      %p39 = por %p37, %p38
      %p40 = scmp.ne.s32.totalorder %s26, %s27
      %p41 = scmp.eq.s32.totalorder %s19, 2
      %p42 = por %p40, %p41
      %p44 = scmp.ne.s32.totalorder %s27, %s43
      %p45 = scmp.eq.s32.totalorder %s19, 0
      %p46 = por %p44, %p45
      %s48 = sadd.s32 %s47, 1
      %p51 = scmp.eq.s32.totalorder %s13, 2
      %p52 = scmp.ne.s32.totalorder %s47, %s49
      %p53 = scmp.eq.s32.totalorder %s13, 0
      %p54 = por %p52, %p53
      %p55 = scmp.ne.s32.totalorder %s47, %s49
      %p56 = scmp.eq.s32.totalorder %s18, 2
      %p57 = por %p55, %p56
      %p58 = scmp.ne.s32.totalorder %s49, %s50
      %p59 = scmp.eq.s32.totalorder %s18, 0
      %p60 = por %p58, %p59
      %p61 = scmp.ne.s32.totalorder %s49, %s50
      %p62 = scmp.eq.s32.totalorder %s19, 2
      %p63 = por %p61, %p62
      %p65 = scmp.ne.s32.totalorder %s50, %s64
      %p66 = scmp.eq.s32.totalorder %s19, 0
      %p67 = por %p65, %p66
      %s69 = sadd.s32 %s68, 1
      %p72 = scmp.eq.s32.totalorder %s13, 2
      %p73 = scmp.ne.s32.totalorder %s68, %s70
      %p74 = scmp.eq.s32.totalorder %s13, 0
      %p75 = por %p73, %p74
      %p76 = scmp.ne.s32.totalorder %s68, %s70
      %p77 = scmp.eq.s32.totalorder %s18, 2
      %p78 = por %p76, %p77
      %p79 = scmp.ne.s32.totalorder %s70, %s71
      %p80 = scmp.eq.s32.totalorder %s18, 0
      %p81 = por %p79, %p80
      %p82 = scmp.ne.s32.totalorder %s70, %s71
      %p83 = scmp.eq.s32.totalorder %s19, 2
      %p84 = por %p82, %p83
      %p86 = scmp.ne.s32.totalorder %s71, %s85
      %p87 = scmp.eq.s32.totalorder %s19, 0
      %p88 = por %p86, %p87
      %s90 = sadd.s32 %s89, 1
      %p93 = scmp.eq.s32.totalorder %s13, 2
      %p94 = scmp.ne.s32.totalorder %s89, %s91
      %p95 = scmp.eq.s32.totalorder %s13, 0
      %p96 = por %p94, %p95
      %p97 = scmp.ne.s32.totalorder %s89, %s91
      %p98 = scmp.eq.s32.totalorder %s18, 2
      %p99 = por %p97, %p98
      %p100 = scmp.ne.s32.totalorder %s91, %s92
      %p101 = scmp.eq.s32.totalorder %s18, 0
      %p102 = por %p100, %p101
      %p103 = scmp.ne.s32.totalorder %s91, %s92
      %p104 = scmp.eq.s32.totalorder %s19, 2
      %p105 = por %p103, %p104
      %p107 = scmp.ne.s32.totalorder %s92, %s106
      %p108 = scmp.eq.s32.totalorder %s19, 0
      %p109 = por %p107, %p108
      %s110 = ssub.s32 %s13, %s20
      %p111 = scmp.eq.s32.totalorder %s110, 0
      %s113 = sadd.s32 %s112, 1
      %s114 = scalar_select %p111, %s112, %s113
      %p117 = pneg %p111
      %p118 = scmp.eq.s32.totalorder %s13, 2
      %p119 = por %p117, %p118
      %p120 = scmp.ne.s32.totalorder %s112, %s115
      %p121 = scmp.eq.s32.totalorder %s13, 0
      %p122 = por %p120, %p121
      %p123 = scmp.ne.s32.totalorder %s112, %s115
      %p124 = scmp.eq.s32.totalorder %s18, 2
      %p125 = por %p123, %p124
      %p126 = scmp.ne.s32.totalorder %s115, %s116
      %p127 = scmp.eq.s32.totalorder %s18, 0
      %p128 = por %p126, %p127
      %p129 = scmp.ne.s32.totalorder %s115, %s116
      %p130 = scmp.eq.s32.totalorder %s19, 2
      %p131 = por %p129, %p130
      %p133 = scmp.ne.s32.totalorder %s116, %s132
      %p134 = scmp.eq.s32.totalorder %s19, 0
      %p135 = por %p133, %p134
      %p136 = scmp.le.s32.totalorder 1, %s13
      %p137 = scmp.lt.s32.totalorder %s13, 4
      %p138 = pnand %p136, %p137
      %p139 = pneg %p138
      // Predicated region
      $region9: #{tpu_custom_call.1} parent=5 // pred_check
        _
      $region10: #{tpu_custom_call.1} parent=5 // pred_check_branch
        %141 = sbr.rel (%p138) target = $region12
      $region11: #{tpu_custom_call.1} parent=5 // pred_region
        %s142 = ssub.s32 %s13, 1
        // Predicated region
        $region13: #{tpu_custom_call.1} parent=11 // pred_check
          %p143 = pneg %p60
        $region14: #{tpu_custom_call.1} parent=11 // pred_check_branch
          %145 = sbr.rel (%p143) target = $region16
        $region15: #{tpu_custom_call.1} parent=11 // pred_region
          _
        $region16: #{tpu_custom_call.1} parent=11 // pred_fallthru
          _
        // Predicated region
        $region17: #{tpu_custom_call.1} parent=11 // pred_check
          %p146 = pneg %p81
        $region18: #{tpu_custom_call.1} parent=11 // pred_check_branch
          %148 = sbr.rel (%p146) target = $region20
        $region19: #{tpu_custom_call.1} parent=11 // pred_region
          _
        $region20: #{tpu_custom_call.1} parent=11 // pred_fallthru
          _
        // Predicated region
        $region21: #{tpu_custom_call.1} parent=11 // pred_check
          %p149 = pneg %p102
        $region22: #{tpu_custom_call.1} parent=11 // pred_check_branch
          %151 = sbr.rel (%p149) target = $region24
        $region23: #{tpu_custom_call.1} parent=11 // pred_region
          _
        $region24: #{tpu_custom_call.1} parent=11 // pred_fallthru
          _
      $region12: #{tpu_custom_call.1} parent=5 // pred_fallthru
        _
      %p152 = scmp.lt.s32.totalorder %s13, 3
      // Predicated region
      $region25: #{tpu_custom_call.1} parent=5 // pred_check
        %p153 = pneg %p152
      $region26: #{tpu_custom_call.1} parent=5 // pred_check_branch
        %155 = sbr.rel (%p153) target = $region28
      $region27: #{tpu_custom_call.1} parent=5 // pred_region
        // Predicated region
        $region29: #{tpu_custom_call.1} parent=27 // pred_check
          %p156 = pneg %p33
        $region30: #{tpu_custom_call.1} parent=27 // pred_check_branch
          %158 = sbr.rel (%p156) target = $region32
        $region31: #{tpu_custom_call.1} parent=27 // pred_region
          %s159 = smul.u32 2, %s13
          %p160 = scmp.lt.s32.totalorder %s159, 5
          %s161 = scalar_select %p160, %s159, 5
          %s162 = smul.addr %s161, 2
          %s163 = scalar_lea.vmem %s0, %s162
          %s164 = smul.u32 2, %s13
        $region32: #{tpu_custom_call.1} parent=27 // pred_fallthru
          _
      $region28: #{tpu_custom_call.1} parent=5 // pred_fallthru
        _
      %p165 = scmp.le.s32.totalorder 1, %s13
      %p166 = scmp.lt.s32.totalorder %s13, 4
      %p167 = pnand %p165, %p166
      %p168 = pneg %p167
      // Predicated region
      $region33: #{tpu_custom_call.1} parent=5 // pred_check
        _
      $region34: #{tpu_custom_call.1} parent=5 // pred_check_branch
        %170 = sbr.rel (%p167) target = $region36
      $region35: #{tpu_custom_call.1} parent=5 // pred_region
        %s171 = ssub.s32 %s13, 1
        %s172 = smul.u32 2, %s18
        %p173 = scmp.lt.s32.totalorder %s172, 5
        %s174 = scalar_select %p173, %s172, 5
        %s175 = smul.addr %s174, 2
        %s176 = scalar_lea.vmem %s0, %s175
        %p177 = pneg %p39
        %p178 = pneg %p36
        %p179 = pneg %p60
        %p180 = pneg %p57
        %p181 = pneg %p81
        %p182 = pneg %p78
        %p183 = pneg %p102
        %p184 = pneg %p99
        %p185 = pneg %p128
        %p186 = pneg %p125
        %s187 = sand.u32 %s115, 1
        %s188 = scalar_lea.sflag [#allocation3], %s187
        %s189 = sand.u32 %s115, 1
        %s190 = smul.addr %s189, 2
        %s191 = scalar_lea.vmem [#allocation2], %s190
        %s192 = smul.u32 2, %s18
        %p193 = scmp.lt.s32.totalorder %s192, 5
        %s194 = scalar_select %p193, %s192, 5
        %s195 = smul.addr %s194, 2
        %s196 = scalar_lea.vmem %s0, %s195
        %s197 = smul.u32 2, %s18
        %s198 = smul.u32 2, %s18
        %v199 = vld [vmem:[%s196] sm:$0xf]
        %v200 = vld [vmem:[%s1] sm:$0xff]
        %v201 = vld [vmem:[%s1 + $0x8] sm:$0xff]
        %v202 = vld [vmem:[%s1 + $0x10] sm:$0xff]
        %v203 = vld [vmem:[%s1 + $0x18] sm:$0xff]
        %205 = vset.pattern.permute.xlu0 0
        %206 = vperm.xlu0 %205, %v200
        %v207 = vpop.permute.xlu0 %206
        %210 = vset.pattern.permute.xlu0 0
        %211 = vperm.xlu0 %210, %v201
        %v212 = vpop.permute.xlu0 %211
        %215 = vset.pattern.permute.xlu0 0
        %216 = vperm.xlu0 %215, %v202
        %v217 = vpop.permute.xlu0 %216
        %220 = vset.pattern.permute.xlu0 0
        %221 = vperm.xlu0 %220, %v203
        %v222 = vpop.permute.xlu0 %221
        %v225 = vperm.slane %v199, 0
        %v226 = vperm.slane %v199, 2
        %v229 = vperm.slane %v225, 0
        %v230 = vperm.slane %v226, 0
        %v231 = vmul.f32 %v207, %v229
        %v232 = vmul.f32 %v207, %v230
        %v233 = vmul.f32 %v212, %v229
        %v234 = vmul.f32 %v212, %v230
        %v235 = vmul.f32 %v217, %v229
        %v236 = vmul.f32 %v217, %v230
        %v237 = vmul.f32 %v222, %v229
        %v238 = vmul.f32 %v222, %v230
        %239 = vset.pattern.permute.xlu0 1
        %240 = vperm.xlu0 %239, %v200
        %v241 = vpop.permute.xlu0 %240
        %243 = vset.pattern.permute.xlu0 1
        %244 = vperm.xlu0 %243, %v201
        %v245 = vpop.permute.xlu0 %244
        %247 = vset.pattern.permute.xlu0 1
        %248 = vperm.xlu0 %247, %v202
        %v249 = vpop.permute.xlu0 %248
        %251 = vset.pattern.permute.xlu0 1
        %252 = vperm.xlu0 %251, %v203
        %v253 = vpop.permute.xlu0 %252
        %v255 = vperm.slane %v199, 1
        %v256 = vperm.slane %v199, 3
        %v259 = vperm.slane %v255, 1
        %v260 = vperm.slane %v256, 1
        %v261 = vmul.f32 %v241, %v259
        %v262 = vmul.f32 %v241, %v260
        %v263 = vmul.f32 %v245, %v259
        %v264 = vmul.f32 %v245, %v260
        %v265 = vmul.f32 %v249, %v259
        %v266 = vmul.f32 %v249, %v260
        %v267 = vmul.f32 %v253, %v259
        %v268 = vmul.f32 %v253, %v260
        %v269 = vadd.f32 %v231, %v261
        %v270 = vadd.f32 %v232, %v262
        %v271 = vadd.f32 %v233, %v263
        %v272 = vadd.f32 %v234, %v264
        %v273 = vadd.f32 %v235, %v265
        %v274 = vadd.f32 %v236, %v266
        %v275 = vadd.f32 %v237, %v267
        %v276 = vadd.f32 %v238, %v268
        %v277 = vld [vmem:[%s3] sm:$0xff]
        %v278 = vld [vmem:[%s3 + $0x8] sm:$0xff]
        %v279 = vld [vmem:[%s3 + $0x10] sm:$0xff]
        %v280 = vld [vmem:[%s3 + $0x18] sm:$0xff]
        %282 = vset.pattern.permute.xlu0 0
        %283 = vperm.xlu0 %282, %v277
        %v284 = vpop.permute.xlu0 %283
        %287 = vset.pattern.permute.xlu0 0
        %288 = vperm.xlu0 %287, %v278
        %v289 = vpop.permute.xlu0 %288
        %292 = vset.pattern.permute.xlu0 0
        %293 = vperm.xlu0 %292, %v279
        %v294 = vpop.permute.xlu0 %293
        %297 = vset.pattern.permute.xlu0 0
        %298 = vperm.xlu0 %297, %v280
        %v299 = vpop.permute.xlu0 %298
        %v301 = vadd.f32 %v269, %v284
        %v302 = vadd.f32 %v270, %v284
        %v303 = vadd.f32 %v271, %v289
        %v304 = vadd.f32 %v272, %v289
        %v305 = vadd.f32 %v273, %v294
        %v306 = vadd.f32 %v274, %v294
        %v307 = vadd.f32 %v275, %v299
        %v308 = vadd.f32 %v276, %v299
        %v309 = vtanh.pop %v301
        %v310 = vtanh.pop %v302
        %v311 = vtanh.pop %v303
        %v312 = vtanh.pop %v304
        %v313 = vtanh.pop %v305
        %v314 = vtanh.pop %v306
        %v315 = vtanh.pop %v307
        %v316 = vtanh.pop %v308
        %v317 = vld [vmem:[%s2] sm:$0xff]
        %v318 = vld [vmem:[%s2 + $0x8] sm:$0xff]
        %v319 = vld [vmem:[%s2 + $0x10] sm:$0xff]
        %v320 = vld [vmem:[%s2 + $0x18] sm:$0xff]
        %s321 = scalar_lea.vmem %s3, 32
        %v322 = vld [vmem:[%s321] sm:$0xff]
        %v323 = vld [vmem:[%s321 + $0x8] sm:$0xff]
        %v324 = vld [vmem:[%s321 + $0x10] sm:$0xff]
        %v325 = vld [vmem:[%s321 + $0x18] sm:$0xff]
        %327 = vset.pattern.permute.xlu0 0
        %328 = vperm.xlu0 %327, %v322
        %v329 = vpop.permute.xlu0 %328
        %332 = vset.pattern.permute.xlu0 0
        %333 = vperm.xlu0 %332, %v323
        %v334 = vpop.permute.xlu0 %333
        %337 = vset.pattern.permute.xlu0 0
        %338 = vperm.xlu0 %337, %v324
        %v339 = vpop.permute.xlu0 %338
        %342 = vset.pattern.permute.xlu0 0
        %343 = vperm.xlu0 %342, %v325
        %v344 = vpop.permute.xlu0 %343
        %vm346 = vcmask 261120
        %v348 = vsel %vm346, %v317, 0
        %v351 = vsel %vm346, %v318, 0
        %v354 = vsel %vm346, %v319, 0
        %v357 = vsel %vm346, %v320, 0
        %359 = vmatpush.msra.mxu0 0.0
        %360 = vmatpush.msra.mxu0 0.0
        %361 = vmatpush.msra.mxu0 0.0
        %362 = vmatpush.msra.mxu0 0.0
        %363 = vmatpush.msra.mxu0 0.0
        %364 = vmatpush.msra.mxu0 0.0
        %365 = vmatpush.msra.mxu0 0.0
        %366 = vmatpush.msra.mxu0 0.0
        %367 = vmatpush.msra.mxu0 0.0
        %368 = vmatpush.msra.mxu0 0.0
        %369 = vmatpush.msra.mxu0 0.0
        %370 = vmatpush.msra.mxu0 0.0
        %371 = vmatpush.msra.mxu0 %v315
        %372 = vmatpush.msra.mxu0 %v313
        %373 = vmatpush.msra.mxu0 %v311
        %374 = vmatpush.msra.mxu0 %v309
        %375 = vmatmul.f32.gmra.mxu0 %v348
        %v376 = vpop.f32.mrf.mxu0
        %v377 = vadd.f32 %v329, %v376
        %378 = vmatmul.f32.gmra.mxu0 %v351
        %v379 = vpop.f32.mrf.mxu0
        %v380 = vadd.f32 %v334, %v379
        %381 = vmatmul.f32.gmra.mxu0 %v354
        %v382 = vpop.f32.mrf.mxu0
        %v383 = vadd.f32 %v339, %v382
        %384 = vmatmul.f32.gmra.mxu0 %v357
        %v385 = vpop.f32.mrf.mxu0
        %v386 = vadd.f32 %v344, %v385
        %387 = vdwg.mxu0
        %388 = vmatpush.msra.mxu0 0.0
        %389 = vmatpush.msra.mxu0 0.0
        %390 = vmatpush.msra.mxu0 0.0
        %391 = vmatpush.msra.mxu0 0.0
        %392 = vmatpush.msra.mxu0 0.0
        %393 = vmatpush.msra.mxu0 0.0
        %394 = vmatpush.msra.mxu0 0.0
        %395 = vmatpush.msra.mxu0 0.0
        %396 = vmatpush.msra.mxu0 0.0
        %397 = vmatpush.msra.mxu0 0.0
        %398 = vmatpush.msra.mxu0 0.0
        %399 = vmatpush.msra.mxu0 0.0
        %400 = vmatpush.msra.mxu0 %v316
        %401 = vmatpush.msra.mxu0 %v314
        %402 = vmatpush.msra.mxu0 %v312
        %403 = vmatpush.msra.mxu0 %v310
        %404 = vmatmul.f32.gmra.mxu0 %v348
        %v405 = vpop.f32.mrf.mxu0
        %v406 = vadd.f32 %v329, %v405
        %407 = vmatmul.f32.gmra.mxu0 %v351
        %v408 = vpop.f32.mrf.mxu0
        %v409 = vadd.f32 %v334, %v408
        %410 = vmatmul.f32.gmra.mxu0 %v354
        %v411 = vpop.f32.mrf.mxu0
        %v412 = vadd.f32 %v339, %v411
        %413 = vmatmul.f32.gmra.mxu0 %v357
        %v414 = vpop.f32.mrf.mxu0
        %v415 = vadd.f32 %v344, %v414
        %416 = vdwg.mxu0
        %v417 = vtanh.pop %v377
        %v418 = vtanh.pop %v406
        %v419 = vtanh.pop %v380
        %v420 = vtanh.pop %v409
        %v421 = vtanh.pop %v383
        %v422 = vtanh.pop %v412
        %v423 = vtanh.pop %v386
        %v424 = vtanh.pop %v415
        %s425 = scalar_lea.vmem %s2, 32
        %v426 = vld [vmem:[%s425] sm:$0xff]
        %v427 = vld [vmem:[%s425 + $0x8] sm:$0xff]
        %v428 = vld [vmem:[%s425 + $0x10] sm:$0xff]
        %v429 = vld [vmem:[%s425 + $0x18] sm:$0xff]
        %s430 = scalar_lea.vmem %s3, 64
        %v431 = vld [vmem:[%s430] sm:$0xff]
        %v432 = vld [vmem:[%s430 + $0x8] sm:$0xff]
        %v433 = vld [vmem:[%s430 + $0x10] sm:$0xff]
        %v434 = vld [vmem:[%s430 + $0x18] sm:$0xff]
        %436 = vset.pattern.permute.xlu0 0
        %437 = vperm.xlu0 %436, %v431
        %v438 = vpop.permute.xlu0 %437
        %441 = vset.pattern.permute.xlu0 0
        %442 = vperm.xlu0 %441, %v432
        %v443 = vpop.permute.xlu0 %442
        %446 = vset.pattern.permute.xlu0 0
        %447 = vperm.xlu0 %446, %v433
        %v448 = vpop.permute.xlu0 %447
        %451 = vset.pattern.permute.xlu0 0
        %452 = vperm.xlu0 %451, %v434
        %v453 = vpop.permute.xlu0 %452
        %v456 = vsel %vm346, %v426, 0
        %v459 = vsel %vm346, %v427, 0
        %v462 = vsel %vm346, %v428, 0
        %v465 = vsel %vm346, %v429, 0
        %467 = vmatpush.msra.mxu0 0.0
        %468 = vmatpush.msra.mxu0 0.0
        %469 = vmatpush.msra.mxu0 0.0
        %470 = vmatpush.msra.mxu0 0.0
        %471 = vmatpush.msra.mxu0 0.0
        %472 = vmatpush.msra.mxu0 0.0
        %473 = vmatpush.msra.mxu0 0.0
        %474 = vmatpush.msra.mxu0 0.0
        %475 = vmatpush.msra.mxu0 0.0
        %476 = vmatpush.msra.mxu0 0.0
        %477 = vmatpush.msra.mxu0 0.0
        %478 = vmatpush.msra.mxu0 0.0
        %479 = vmatpush.msra.mxu0 %v423
        %480 = vmatpush.msra.mxu0 %v421
        %481 = vmatpush.msra.mxu0 %v419
        %482 = vmatpush.msra.mxu0 %v417
        %483 = vmatmul.f32.gmra.mxu0 %v456
        %v484 = vpop.f32.mrf.mxu0
        %v485 = vadd.f32 %v438, %v484
        %486 = vmatmul.f32.gmra.mxu0 %v459
        %v487 = vpop.f32.mrf.mxu0
        %v488 = vadd.f32 %v443, %v487
        %489 = vmatmul.f32.gmra.mxu0 %v462
        %v490 = vpop.f32.mrf.mxu0
        %v491 = vadd.f32 %v448, %v490
        %492 = vmatmul.f32.gmra.mxu0 %v465
        %v493 = vpop.f32.mrf.mxu0
        %v494 = vadd.f32 %v453, %v493
        %495 = vdwg.mxu0
        %496 = vmatpush.msra.mxu0 0.0
        %497 = vmatpush.msra.mxu0 0.0
        %498 = vmatpush.msra.mxu0 0.0
        %499 = vmatpush.msra.mxu0 0.0
        %500 = vmatpush.msra.mxu0 0.0
        %501 = vmatpush.msra.mxu0 0.0
        %502 = vmatpush.msra.mxu0 0.0
        %503 = vmatpush.msra.mxu0 0.0
        %504 = vmatpush.msra.mxu0 0.0
        %505 = vmatpush.msra.mxu0 0.0
        %506 = vmatpush.msra.mxu0 0.0
        %507 = vmatpush.msra.mxu0 0.0
        %508 = vmatpush.msra.mxu0 %v424
        %509 = vmatpush.msra.mxu0 %v422
        %510 = vmatpush.msra.mxu0 %v420
        %511 = vmatpush.msra.mxu0 %v418
        %512 = vmatmul.f32.gmra.mxu0 %v456
        %v513 = vpop.f32.mrf.mxu0
        %v514 = vadd.f32 %v438, %v513
        %515 = vmatmul.f32.gmra.mxu0 %v459
        %v516 = vpop.f32.mrf.mxu0
        %v517 = vadd.f32 %v443, %v516
        %518 = vmatmul.f32.gmra.mxu0 %v462
        %v519 = vpop.f32.mrf.mxu0
        %v520 = vadd.f32 %v448, %v519
        %521 = vmatmul.f32.gmra.mxu0 %v465
        %v522 = vpop.f32.mrf.mxu0
        %v523 = vadd.f32 %v453, %v522
        %524 = vdwg.mxu0
        %v525 = vtanh.pop %v485
        %v526 = vtanh.pop %v514
        %v527 = vtanh.pop %v488
        %v528 = vtanh.pop %v517
        %v529 = vtanh.pop %v491
        %v530 = vtanh.pop %v520
        %v531 = vtanh.pop %v494
        %v532 = vtanh.pop %v523
        %s533 = scalar_lea.vmem %s2, 64
        %v534 = vld [vmem:[%s533] sm:$0xff]
        %v535 = vld [vmem:[%s533 + $0x8] sm:$0xff]
        %v536 = vld [vmem:[%s533 + $0x10] sm:$0xff]
        %v537 = vld [vmem:[%s533 + $0x18] sm:$0xff]
        %s538 = scalar_lea.vmem %s3, 96
        %v539 = vld [vmem:[%s538] sm:$0xff]
        %v540 = vld [vmem:[%s538 + $0x8] sm:$0xff]
        %v541 = vld [vmem:[%s538 + $0x10] sm:$0xff]
        %v542 = vld [vmem:[%s538 + $0x18] sm:$0xff]
        %544 = vset.pattern.permute.xlu0 0
        %545 = vperm.xlu0 %544, %v539
        %v546 = vpop.permute.xlu0 %545
        %549 = vset.pattern.permute.xlu0 0
        %550 = vperm.xlu0 %549, %v540
        %v551 = vpop.permute.xlu0 %550
        %553 = vset.pattern.permute.xlu0 0
        %554 = vperm.xlu0 %553, %v541
        %v555 = vpop.permute.xlu0 %554
        %557 = vset.pattern.permute.xlu0 0
        %558 = vperm.xlu0 %557, %v542
        %v559 = vpop.permute.xlu0 %558
        %v561 = vsel %vm346, %v534, 0
        %v564 = vsel %vm346, %v535, 0
        %v567 = vsel %vm346, %v536, 0
        %v570 = vsel %vm346, %v537, 0
        %572 = vmatpush.msra.mxu0 0.0
        %573 = vmatpush.msra.mxu0 0.0
        %574 = vmatpush.msra.mxu0 0.0
        %575 = vmatpush.msra.mxu0 0.0
        %576 = vmatpush.msra.mxu0 0.0
        %577 = vmatpush.msra.mxu0 0.0
        %578 = vmatpush.msra.mxu0 0.0
        %579 = vmatpush.msra.mxu0 0.0
        %580 = vmatpush.msra.mxu0 0.0
        %581 = vmatpush.msra.mxu0 0.0
        %582 = vmatpush.msra.mxu0 0.0
        %583 = vmatpush.msra.mxu0 0.0
        %584 = vmatpush.msra.mxu0 %v531
        %585 = vmatpush.msra.mxu0 %v529
        %586 = vmatpush.msra.mxu0 %v527
        %587 = vmatpush.msra.mxu0 %v525
        %588 = vmatmul.f32.gmra.mxu0 %v561
        %v589 = vpop.f32.mrf.mxu0
        %v590 = vadd.f32 %v546, %v589
        %591 = vmatmul.f32.gmra.mxu0 %v564
        %v592 = vpop.f32.mrf.mxu0
        %593 = vmatmul.f32.gmra.mxu0 %v567
        %v594 = vpop.f32.mrf.mxu0
        %595 = vmatmul.f32.gmra.mxu0 %v570
        %v596 = vpop.f32.mrf.mxu0
        %597 = vdwg.mxu0
        %598 = vmatpush.msra.mxu0 0.0
        %599 = vmatpush.msra.mxu0 0.0
        %600 = vmatpush.msra.mxu0 0.0
        %601 = vmatpush.msra.mxu0 0.0
        %602 = vmatpush.msra.mxu0 0.0
        %603 = vmatpush.msra.mxu0 0.0
        %604 = vmatpush.msra.mxu0 0.0
        %605 = vmatpush.msra.mxu0 0.0
        %606 = vmatpush.msra.mxu0 0.0
        %607 = vmatpush.msra.mxu0 0.0
        %608 = vmatpush.msra.mxu0 0.0
        %609 = vmatpush.msra.mxu0 0.0
        %610 = vmatpush.msra.mxu0 %v532
        %611 = vmatpush.msra.mxu0 %v530
        %612 = vmatpush.msra.mxu0 %v528
        %613 = vmatpush.msra.mxu0 %v526
        %614 = vmatmul.f32.gmra.mxu0 %v561
        %v615 = vpop.f32.mrf.mxu0
        %v616 = vadd.f32 %v546, %v615
        %617 = vmatmul.f32.gmra.mxu0 %v564
        %v618 = vpop.f32.mrf.mxu0
        %619 = vmatmul.f32.gmra.mxu0 %v567
        %v620 = vpop.f32.mrf.mxu0
        %621 = vmatmul.f32.gmra.mxu0 %v570
        %v622 = vpop.f32.mrf.mxu0
        %623 = vdwg.mxu0
        %v626 = vrot.slane %v616, 7
        %vm627 = vcmask 1040384
        %v628 = vsel %vm627, %v590, %v626
        %v630 = vlaneseq
        %vm631 = vcmp.ge.s32.totalorder %v630, 0
        %vm632 = vcmp.lt.s32.totalorder %v630, 256
        %vm633 = vmand %vm631, %vm632
        %634 = vst.msk [vmem:[%s191] sm:$0x3] %vm633, %v628
        %s635 = sand.u32 %s115, 1
        %s636 = scalar_lea.sflag [#allocation3], %s635
        %s637 = sand.u32 %s115, 1
        %s638 = smul.addr %s637, 2
        %s639 = scalar_lea.vmem [#allocation2], %s638
        // Predicated region
        $region37: #{tpu_custom_call.1} parent=35 // pred_check
          %p640 = pneg %p125
        $region38: #{tpu_custom_call.1} parent=35 // pred_check_branch
          %642 = sbr.rel (%p640) target = $region40
        $region39: #{tpu_custom_call.1} parent=35 // pred_region
          %s643 = smul.u32 2, %s18
          %645 = vsyncadd %s636, 0
          %s646 = scalar_lea.hbm %s4, %s643
          %s648 = sshll.u32 %s639, 4
          %s649 = int_to_ptr.vmem [resolvable:$true] %s648
          %s650 = sshll.u32 %s646, 4
          %s651 = int_to_ptr.hbm [resolvable:$true] %s650
          %653 = dma.vmem_to_hbm [thread:$0]  %s649, 32, %s651, %s636
        $region40: #{tpu_custom_call.1} parent=35 // pred_fallthru
          _
      $region36: #{tpu_custom_call.1} parent=5 // pred_fallthru
        _
      %p654 = scmp.le.s32.totalorder 2, %s13
      // Predicated region
      $region41: #{tpu_custom_call.1} parent=5 // pred_check
        %p655 = pneg %p654
      $region42: #{tpu_custom_call.1} parent=5 // pred_check_branch
        %657 = sbr.rel (%p655) target = $region44
      $region43: #{tpu_custom_call.1} parent=5 // pred_region
        %s658 = ssub.s32 %s13, 2
        // Predicated region
        $region45: #{tpu_custom_call.1} parent=43 // pred_check
          %p659 = pneg %p131
        $region46: #{tpu_custom_call.1} parent=43 // pred_check_branch
          %661 = sbr.rel (%p659) target = $region48
        $region47: #{tpu_custom_call.1} parent=43 // pred_region
          %s662 = sand.u32 %s116, 1
          %s663 = scalar_lea.sflag [#allocation3], %s662
          %s664 = sand.u32 %s116, 1
          %s665 = smul.addr %s664, 2
          %s666 = scalar_lea.vmem [#allocation2], %s665
          %668 = dma.done %s663, 32
        $region48: #{tpu_custom_call.1} parent=43 // pred_fallthru
          _
      $region44: #{tpu_custom_call.1} parent=5 // pred_fallthru
        _
    $region6: #{tpu_custom_call.1} parent=1 // loop_footer
      %s17 = sadd.s32 1, %s13
    $region7: #{tpu_custom_call.1} parent=1 // loop_footer_branch
      %12 = sbr.rel target = $region3
    $region8: #{tpu_custom_call.1} parent=1 // loop_exit
      _
    %669 = vsyncpa [#allocation3], 1
    %s670 = scalar_lea.sflag [#allocation3], 1
    %671 = vsyncpa %s670, 1

</llo_original>
